<compile_context>
chip_gen: v7x
topology: tpu7x:2x2x1
jax: 0.10.0
libtpu: 0.0.40
codegen_flags: <defaults>
</compile_context>

<pallas_src>
import jax
import jax.numpy as jnp
from jax.experimental import pallas as pl
from jax.experimental.pallas import tpu as pltpu

KH = KW = 3                 # conv taps
_NTAPS = KH * KW
_SUBLANE = 8
_LANE = 128


def _round_up(x, m):
    return (x + m - 1) // m * m


def _default_compute_dtype():
    """bf16 on v6e/v7x (bf16 MXU/VPU, halves DMA + im2col scratch); f32 else."""
    try:
        kind = jax.devices()[0].device_kind.lower()
    except Exception:
        return None
    if ("v6" in kind) or ("v7" in kind) or ("7x" in kind):
        return jnp.bfloat16
    return None


def _make_kernel(*, W, P, bt, Cp, K_taps, K_pad):
    """Per-block kernel; closes over static geometry."""
    N = bt * P
    taps = [(kh - 1, kw - 1) for kh in range(KH) for kw in range(KW)]

    def kernel(t_ref, x_ref, w_ref, mask_ref, dx_ref, kep_ref, rhs_ref):
        # t_ref   : SMEM (1,)            scalar time
        # x_ref   : VMEM (Cp, N)         channel-major state block (channel-padded)
        # w_ref   : VMEM (Cpout, K_pad)  folded weights [taps | time taps | bias | pad]
        # mask_ref: VMEM (9, N)          per-tap boundary masks (grid-invariant)
        # dx_ref  : VMEM (Cpout, N)      d_state block (lane-dense store)
        # kep_ref : VMEM (1, N)          per-pixel sum_c dx^2 partials (f32)
        # rhs_ref : VMEM (K_pad, N)      im2col scratch
        t = t_ref[0]

        # Grid-invariant RHS rows (time-channel taps + bias/pad ones).  Written
        # every step (cheap, 10+pad rows) instead of being gated on
        # program_id == 0 so megacore sharding of the "parallel" batch axis
        # stays correct (each TensorCore has its own scratch).
        rhs_ref[K_taps:K_taps + _NTAPS, :] = (mask_ref[...] * t).astype(rhs_ref.dtype)
        rhs_ref[K_taps + _NTAPS:K_pad, :] = jnp.ones(
            (K_pad - K_taps - _NTAPS, N), rhs_ref.dtype)

        x = x_ref[...]
        # The 9 conv taps are lane-rolls of the flattened (bt*H*W) axis.
        # |shift| <= W + 1 < P, and every wrapped position (across samples
        # inside the tile or around the block ends) coincides with a masked
        # row/col border, so the boundary mask also zeroes the wrap-around.
        # (Dilated / larger taps would break this -- see assert in the wrapper.)
        for k, (dr, dc) in enumerate(taps):
            s = dr * W + dc
            piece = x if s == 0 else pltpu.roll(x, shift=(-s) % N, axis=1)
            if (dr, dc) != (0, 0):
                piece = piece * mask_ref[k:k + 1, :]
            rhs_ref[k * Cp:(k + 1) * Cp, :] = piece

        # Single MXU pass; bias + time channel arrive through the extra rows.
        acc = jnp.dot(w_ref[...], rhs_ref[...], preferred_element_type=jnp.float32)
        dx_ref[...] = acc.astype(dx_ref.dtype)

        # Kinetic-energy partial from the f32 accumulator (channel-padded rows
        # are exactly zero); the per-sample mean finishes in XLA on this row.
        kep_ref[...] = jnp.sum(acc * acc, axis=0, keepdims=True)

    return kernel


def make_concat_conv2d(w, b, *, batch, height, width,
                       compute_dtype=None, out_dtype=jnp.float32,
                       vmem_budget_bytes=40 * 1024 * 1024,
                       vmem_limit_bytes=48 * 1024 * 1024):
    """Prepares ode_func(t, x_nchw) -> (dx_nchw, kinetic_energy_per_sample).

    All grid-invariant work (weight folding, boundary masks, block sizing,
    pallas_call construction) happens here, once.  The per-call path is just
    the NCHW <-> channel-major layout change plus the kernel.
    x: (B, C, H, W).  w: (3, 3, C+1, Cout) HWIO.  b: (1, Cout).
    """
    kh_, kw_, Cin, Cout = w.shape
    assert (kh_, kw_) == (KH, KW)
    C = Cin - 1
    B, H, W = batch, height, width
    P = H * W
    # roll-based im2col: wraps only at masked borders needs |shift| <= W+1 < P
    assert W + 1 < P, "roll-based im2col requires |tap shift| < H*W"

    compute_dtype = compute_dtype or _default_compute_dtype() or jnp.float32

    # Pad channels so pieces / accumulator / stores fill (8,128) sublanes, and
    # pad K (= 9*Cp + 9 time rows + 1 bias row) to a multiple of 8.
    Cp = _round_up(max(C, 1), _SUBLANE)
    Cpout = _round_up(Cout, _SUBLANE)
    K_taps = _NTAPS * Cp
    K_pad = _round_up(K_taps + _NTAPS + 1, _SUBLANE)

    # ---- folded weight matrix (Cpout, K_pad): taps | time taps | bias | 0-pad
    wf = w.astype(jnp.float32)
    w_x = jnp.zeros((KH, KW, Cp, Cout), jnp.float32).at[:, :, :C, :].set(wf[:, :, :C, :])
    w_x = jnp.transpose(w_x.reshape(_NTAPS * Cp, Cout))              # (Cout, 9*Cp)
    w_t = jnp.transpose(wf[:, :, C, :].reshape(_NTAPS, Cout))        # (Cout, 9)
    b_col = jnp.reshape(b.astype(jnp.float32), (Cout, 1))            # (Cout, 1)
    w_full = jnp.concatenate(
        [w_x, w_t, b_col,
         jnp.zeros((Cout, K_pad - K_taps - _NTAPS - 1), jnp.float32)], axis=1)
    w_full = jnp.zeros((Cpout, K_pad), jnp.float32).at[:Cout, :].set(w_full)
    w_full = w_full.astype(compute_dtype)

    # ---- per-tap boundary masks (9, P): tap (dr,dc) valid at pixel (r,c) iff
    #      (r+dr, c+dc) stays inside the image (also what the zero-padded
    #      t*ones channel sees, so the same masks drive the time-channel rows).
    rows = jnp.arange(P, dtype=jnp.int32) // W
    cols = jnp.arange(P, dtype=jnp.int32) % W
    masks = []
    for kh in range(KH):
        for kw in range(KW):
            dr, dc = kh - 1, kw - 1
            ok = ((rows + dr >= 0) & (rows + dr <= H - 1)
                  & (cols + dc >= 0) & (cols + dc <= W - 1))
            masks.append(ok)
    mask_p = jnp.stack(masks, axis=0).astype(jnp.float32)            # (9, P)

    # ---- batch-tile selection from an explicit VMEM budget (v7x 64 MiB safe).
    ce = jnp.dtype(compute_dtype).itemsize
    oe = jnp.dtype(out_dtype).itemsize

    def est_vmem(bt_):
        n = bt_ * P
        mask_rows = _round_up(_NTAPS, _SUBLANE)
        return n * (2 * Cp * ce            # x block, double-buffered
                    + K_pad * ce           # im2col scratch
                    + 2 * mask_rows * ce   # resident tap masks
                    + 2 * Cpout * oe       # dx block, double-buffered
                    + 2 * 4                # kinetic partial row
                    + 3 * Cpout * 4)       # acc / dx^2 temporaries

    bt = 1
    for cand in range(B, 0, -1):           # largest feasible tile -> fewest steps
        if B % cand:
            continue
        if (cand * P) % _LANE and cand != B:   # block lane dim must be 128-aligned
            continue
        if est_vmem(cand) <= vmem_budget_bytes:
            bt = cand
            break
    nsteps = B // bt
    # TODO(synk): when nsteps > 1 on v7x, prefer an even nsteps so the
    #             "parallel" batch axis shards evenly across the 2 TensorCores.
    N = bt * P
    mask_blk = jnp.tile(mask_p, (1, bt)).astype(compute_dtype)       # (9, N)

    kernel = _make_kernel(W=W, P=P, bt=bt, Cp=Cp, K_taps=K_taps, K_pad=K_pad)

    call = pl.pallas_call(
        kernel,
        grid=(nsteps,),
        in_specs=[
            pl.BlockSpec(memory_space=pltpu.MemorySpace.SMEM),        # t (scalar)
            pl.BlockSpec((Cp, N), lambda i: (0, i)),                  # x, channel-major
            pl.BlockSpec((Cpout, K_pad), lambda i: (0, 0)),           # weights (resident)
            pl.BlockSpec((_NTAPS, N), lambda i: (0, 0)),              # tap masks (resident)
        ],
        out_specs=(
            pl.BlockSpec((Cpout, N), lambda i: (0, i)),               # d_state
            pl.BlockSpec((1, N), lambda i: (0, i)),                   # kinetic partials
        ),
        out_shape=(
            jax.ShapeDtypeStruct((Cpout, B * P), out_dtype),
            jax.ShapeDtypeStruct((1, B * P), jnp.float32),
        ),
        scratch_shapes=[pltpu.VMEM((K_pad, N), compute_dtype)],
        compiler_params=pltpu.CompilerParams(
            dimension_semantics=("parallel",),
            vmem_limit_bytes=vmem_limit_bytes,
        ),
    )

    def ode_func(t, x):
        # NOTE: a solver that calls this many times per step should keep the
        # state channel-major ((C, B*H*W)) across iterations; these transposes
        # are the only per-call layout cost and vanish in that setup.
        x_cm = jnp.transpose(x, (1, 0, 2, 3)).reshape(C, B * P).astype(compute_dtype)
        if Cp != C:
            x_cm = jnp.concatenate(
                [x_cm, jnp.zeros((Cp - C, B * P), compute_dtype)], axis=0)
        t_arr = jnp.reshape(jnp.asarray(t, jnp.float32), (1,))
        dx_cm, ke_rows = call(t_arr, x_cm, w_full, mask_blk)
        dx = jnp.transpose(dx_cm[:Cout].reshape(Cout, B, H, W), (1, 0, 2, 3))
        kinetic = (0.5 / float(Cout * P)) * jnp.sum(ke_rows.reshape(B, P), axis=1)
        return dx, kinetic

    return ode_func


def make_regularized_ode_func(params, x_shape, *, state_dtype=jnp.float32,
                              compute_dtype=None):
    """Builds RegularizedOdeFunc.forward with ode_func = ConcatConv2d and
    reg_funcs = [kinetic_energy].  Grid-invariant prep is hoisted here."""
    B, C, H, W = x_shape
    assert params["w"].shape[2] == C + 1
    conv = make_concat_conv2d(params["w"], params["b"],
                              batch=B, height=H, width=W,
                              compute_dtype=compute_dtype, out_dtype=state_dtype)

    def forward(t, state):
        x = state[0]
        d_state, kinetic = conv(t, x)
        if len(state) > 1:
            return (d_state, kinetic)     # one reg_func: kinetic energy
        return d_state

    return forward


if __name__ == "__main__":
    B, C, H, W = 2, 4, 16, 16
    Cin = C + 1

    key = jax.random.PRNGKey(0)
    kw_, kb_, kx_ = jax.random.split(key, 3)

    params = {
        "w": jax.random.normal(kw_, (KH, KW, Cin, C), jnp.float32)
        * (1.0 / jnp.sqrt(float(KH * KW * Cin))),
        "b": jax.random.normal(kb_, (1, C), jnp.float32) * 0.1,
    }

    x = jax.random.normal(kx_, (B, C, H, W), jnp.float32)
    t = jnp.float32(0.5)
    # len(state) > 1  ->  regularized path (d_state, reg_states...)
    state = (x, jnp.zeros((B,), jnp.float32))

    compute_dtype = _default_compute_dtype() or jnp.float32
    forward = make_regularized_ode_func(params, (B, C, H, W),
                                        state_dtype=x.dtype,
                                        compute_dtype=compute_dtype)

    d_state, kinetic = forward(t, state)
    jax.block_until_ready(d_state)
    jax.block_until_ready(kinetic)

    # Reference check in plain JAX (concat-based conv, same math).
    x_nhwc = jnp.transpose(x, (0, 2, 3, 1))
    xt = jnp.concatenate(
        [x_nhwc, jnp.full((B, H, W, 1), t, jnp.float32)], axis=-1)
    ref = jax.lax.conv_general_dilated(
        xt, params["w"], (1, 1), "SAME",
        dimension_numbers=("NHWC", "HWIO", "NHWC"),
    ) + params["b"].reshape(1, 1, 1, C)
    ref_d_state = jnp.transpose(ref, (0, 3, 1, 2))
    ref_kinetic = 0.5 * jnp.mean(ref * ref, axis=(1, 2, 3))

    tol = 2e-4 if compute_dtype == jnp.float32 else 6e-2
    assert d_state.shape == (B, C, H, W) and kinetic.shape == (B,)
    assert jnp.allclose(d_state, ref_d_state, atol=tol, rtol=tol)
    assert jnp.allclose(kinetic, ref_kinetic, atol=tol, rtol=tol)

    print("KERNEL_OK")
</pallas_src>

<mosaic_0001>
module attributes {stable_mosaic.version = 11 : i64} {
  func.func @kernel(%arg0: i32, %arg1: memref<1xf32, #tpu.memory_space<smem>>, %arg2: memref<8x512xf32, #tpu.memory_space<vmem>>, %arg3: memref<8x88xf32, #tpu.memory_space<vmem>>, %arg4: memref<9x512xf32, #tpu.memory_space<vmem>>, %arg5: memref<8x512xf32, #tpu.memory_space<vmem>>, %arg6: memref<1x512xf32, #tpu.memory_space<vmem>>, %arg7: memref<88x512xf32, #tpu.memory_space<vmem>>) attributes {dimension_semantics = [#tpu.dimension_semantics<parallel>], iteration_bounds = array<i64: 1>, scalar_prefetch = 0 : i64, scratch_operands = 1 : i64, tpu.core_type = #tpu.core_type<tc>, window_params = [{transform_indices = @transform_0, window_bounds = array<i64: 1>}, {transform_indices = @transform_1, window_bounds = array<i64: 8, 512>}, {pipeline_mode = #tpu.pipeline_mode<synchronous>, transform_indices = @transform_2, window_bounds = array<i64: 8, 88>}, {pipeline_mode = #tpu.pipeline_mode<synchronous>, transform_indices = @transform_3, window_bounds = array<i64: 9, 512>}, {transform_indices = @transform_4, window_bounds = array<i64: 8, 512>}, {transform_indices = @transform_5, window_bounds = array<i64: 1, 512>}]} {
    %c0 = arith.constant 0 : index
    %0 = memref.load %arg1[%c0] : memref<1xf32, #tpu.memory_space<smem>>
    %c0_0 = arith.constant 0 : index
    %c0_1 = arith.constant 0 : index
    %1 = vector.load %arg4[%c0_0, %c0_1] : memref<9x512xf32, #tpu.memory_space<vmem>>, vector<9x512xf32>
    %2 = vector.broadcast %0 : f32 to vector<9x512xf32>
    %3 = arith.mulf %1, %2 : vector<9x512xf32>
    %c72 = arith.constant 72 : index
    %c0_2 = arith.constant 0 : index
    %4 = vector.load %arg7[%c72, %c0_2] : memref<88x512xf32, #tpu.memory_space<vmem>>, vector<9x512xf32>
    tpu.vector_store %arg7[%c72, %c0_2], %3 {strides = array<i32>} : memref<88x512xf32, #tpu.memory_space<vmem>>, vector<9x512xf32>,
    %cst = arith.constant 1.000000e+00 : f32
    %5 = vector.broadcast %cst : f32 to vector<7x512xf32>
    %c81 = arith.constant 81 : index
    %c0_3 = arith.constant 0 : index
    %6 = vector.load %arg7[%c81, %c0_3] : memref<88x512xf32, #tpu.memory_space<vmem>>, vector<7x512xf32>
    tpu.vector_store %arg7[%c81, %c0_3], %5 {strides = array<i32>} : memref<88x512xf32, #tpu.memory_space<vmem>>, vector<7x512xf32>,
    %c0_4 = arith.constant 0 : index
    %c0_5 = arith.constant 0 : index
    %7 = vector.load %arg2[%c0_4, %c0_5] : memref<8x512xf32, #tpu.memory_space<vmem>>, vector<8x512xf32>
    %c17_i32 = arith.constant 17 : i32
    %8 = tpu.dynamic_rotate %7 by %c17_i32 dim 1 : vector<8x512xf32>, i32 -> vector<8x512xf32>
    %c0_6 = arith.constant 0 : index
    %c0_7 = arith.constant 0 : index
    %9 = vector.load %arg4[%c0_6, %c0_7] : memref<9x512xf32, #tpu.memory_space<vmem>>, vector<1x512xf32>
    %10 = vector.broadcast %9 : vector<1x512xf32> to vector<8x512xf32>
    %11 = arith.mulf %8, %10 : vector<8x512xf32>
    %c0_8 = arith.constant 0 : index
    %c0_9 = arith.constant 0 : index
    %12 = vector.load %arg7[%c0_8, %c0_9] : memref<88x512xf32, #tpu.memory_space<vmem>>, vector<8x512xf32>
    tpu.vector_store %arg7[%c0_8, %c0_9], %11 {strides = array<i32>} : memref<88x512xf32, #tpu.memory_space<vmem>>, vector<8x512xf32>,
    %c16_i32 = arith.constant 16 : i32
    %13 = tpu.dynamic_rotate %7 by %c16_i32 dim 1 : vector<8x512xf32>, i32 -> vector<8x512xf32>
    %c1 = arith.constant 1 : index
    %c0_10 = arith.constant 0 : index
    %14 = vector.load %arg4[%c1, %c0_10] : memref<9x512xf32, #tpu.memory_space<vmem>>, vector<1x512xf32>
    %15 = vector.broadcast %14 : vector<1x512xf32> to vector<8x512xf32>
    %16 = arith.mulf %13, %15 : vector<8x512xf32>
    %c8 = arith.constant 8 : index
    %c0_11 = arith.constant 0 : index
    %17 = vector.load %arg7[%c8, %c0_11] : memref<88x512xf32, #tpu.memory_space<vmem>>, vector<8x512xf32>
    tpu.vector_store %arg7[%c8, %c0_11], %16 {strides = array<i32>} : memref<88x512xf32, #tpu.memory_space<vmem>>, vector<8x512xf32>,
    %c15_i32 = arith.constant 15 : i32
    %18 = tpu.dynamic_rotate %7 by %c15_i32 dim 1 : vector<8x512xf32>, i32 -> vector<8x512xf32>
    %c2 = arith.constant 2 : index
    %c0_12 = arith.constant 0 : index
    %19 = vector.load %arg4[%c2, %c0_12] : memref<9x512xf32, #tpu.memory_space<vmem>>, vector<1x512xf32>
    %20 = vector.broadcast %19 : vector<1x512xf32> to vector<8x512xf32>
    %21 = arith.mulf %18, %20 : vector<8x512xf32>
    %c16 = arith.constant 16 : index
    %c0_13 = arith.constant 0 : index
    %22 = vector.load %arg7[%c16, %c0_13] : memref<88x512xf32, #tpu.memory_space<vmem>>, vector<8x512xf32>
    tpu.vector_store %arg7[%c16, %c0_13], %21 {strides = array<i32>} : memref<88x512xf32, #tpu.memory_space<vmem>>, vector<8x512xf32>,
    %c1_i32 = arith.constant 1 : i32
    %23 = tpu.dynamic_rotate %7 by %c1_i32 dim 1 : vector<8x512xf32>, i32 -> vector<8x512xf32>
    %c3 = arith.constant 3 : index
    %c0_14 = arith.constant 0 : index
    %24 = vector.load %arg4[%c3, %c0_14] : memref<9x512xf32, #tpu.memory_space<vmem>>, vector<1x512xf32>
    %25 = vector.broadcast %24 : vector<1x512xf32> to vector<8x512xf32>
    %26 = arith.mulf %23, %25 : vector<8x512xf32>
    %c24 = arith.constant 24 : index
    %c0_15 = arith.constant 0 : index
    %27 = vector.load %arg7[%c24, %c0_15] : memref<88x512xf32, #tpu.memory_space<vmem>>, vector<8x512xf32>
    tpu.vector_store %arg7[%c24, %c0_15], %26 {strides = array<i32>} : memref<88x512xf32, #tpu.memory_space<vmem>>, vector<8x512xf32>,
    %c32 = arith.constant 32 : index
    %c0_16 = arith.constant 0 : index
    %28 = vector.load %arg7[%c32, %c0_16] : memref<88x512xf32, #tpu.memory_space<vmem>>, vector<8x512xf32>
    tpu.vector_store %arg7[%c32, %c0_16], %7 {strides = array<i32>} : memref<88x512xf32, #tpu.memory_space<vmem>>, vector<8x512xf32>,
    %c511_i32 = arith.constant 511 : i32
    %29 = tpu.dynamic_rotate %7 by %c511_i32 dim 1 : vector<8x512xf32>, i32 -> vector<8x512xf32>
    %c5 = arith.constant 5 : index
    %c0_17 = arith.constant 0 : index
    %30 = vector.load %arg4[%c5, %c0_17] : memref<9x512xf32, #tpu.memory_space<vmem>>, vector<1x512xf32>
    %31 = vector.broadcast %30 : vector<1x512xf32> to vector<8x512xf32>
    %32 = arith.mulf %29, %31 : vector<8x512xf32>
    %c40 = arith.constant 40 : index
    %c0_18 = arith.constant 0 : index
    %33 = vector.load %arg7[%c40, %c0_18] : memref<88x512xf32, #tpu.memory_space<vmem>>, vector<8x512xf32>
    tpu.vector_store %arg7[%c40, %c0_18], %32 {strides = array<i32>} : memref<88x512xf32, #tpu.memory_space<vmem>>, vector<8x512xf32>,
    %c497_i32 = arith.constant 497 : i32
    %34 = tpu.dynamic_rotate %7 by %c497_i32 dim 1 : vector<8x512xf32>, i32 -> vector<8x512xf32>
    %c6 = arith.constant 6 : index
    %c0_19 = arith.constant 0 : index
    %35 = vector.load %arg4[%c6, %c0_19] : memref<9x512xf32, #tpu.memory_space<vmem>>, vector<1x512xf32>
    %36 = vector.broadcast %35 : vector<1x512xf32> to vector<8x512xf32>
    %37 = arith.mulf %34, %36 : vector<8x512xf32>
    %c48 = arith.constant 48 : index
    %c0_20 = arith.constant 0 : index
    %38 = vector.load %arg7[%c48, %c0_20] : memref<88x512xf32, #tpu.memory_space<vmem>>, vector<8x512xf32>
    tpu.vector_store %arg7[%c48, %c0_20], %37 {strides = array<i32>} : memref<88x512xf32, #tpu.memory_space<vmem>>, vector<8x512xf32>,
    %c496_i32 = arith.constant 496 : i32
    %39 = tpu.dynamic_rotate %7 by %c496_i32 dim 1 : vector<8x512xf32>, i32 -> vector<8x512xf32>
    %c7 = arith.constant 7 : index
    %c0_21 = arith.constant 0 : index
    %40 = vector.load %arg4[%c7, %c0_21] : memref<9x512xf32, #tpu.memory_space<vmem>>, vector<1x512xf32>
    %41 = vector.broadcast %40 : vector<1x512xf32> to vector<8x512xf32>
    %42 = arith.mulf %39, %41 : vector<8x512xf32>
    %c56 = arith.constant 56 : index
    %c0_22 = arith.constant 0 : index
    %43 = vector.load %arg7[%c56, %c0_22] : memref<88x512xf32, #tpu.memory_space<vmem>>, vector<8x512xf32>
    tpu.vector_store %arg7[%c56, %c0_22], %42 {strides = array<i32>} : memref<88x512xf32, #tpu.memory_space<vmem>>, vector<8x512xf32>,
    %c495_i32 = arith.constant 495 : i32
    %44 = tpu.dynamic_rotate %7 by %c495_i32 dim 1 : vector<8x512xf32>, i32 -> vector<8x512xf32>
    %c8_23 = arith.constant 8 : index
    %c0_24 = arith.constant 0 : index
    %45 = vector.load %arg4[%c8_23, %c0_24] : memref<9x512xf32, #tpu.memory_space<vmem>>, vector<1x512xf32>
    %46 = vector.broadcast %45 : vector<1x512xf32> to vector<8x512xf32>
    %47 = arith.mulf %44, %46 : vector<8x512xf32>
    %c64 = arith.constant 64 : index
    %c0_25 = arith.constant 0 : index
    %48 = vector.load %arg7[%c64, %c0_25] : memref<88x512xf32, #tpu.memory_space<vmem>>, vector<8x512xf32>
    tpu.vector_store %arg7[%c64, %c0_25], %47 {strides = array<i32>} : memref<88x512xf32, #tpu.memory_space<vmem>>, vector<8x512xf32>,
    %c0_26 = arith.constant 0 : index
    %c0_27 = arith.constant 0 : index
    %49 = vector.load %arg3[%c0_26, %c0_27] : memref<8x88xf32, #tpu.memory_space<vmem>>, vector<8x88xf32>
    %c0_28 = arith.constant 0 : index
    %c0_29 = arith.constant 0 : index
    %50 = vector.load %arg7[%c0_28, %c0_29] : memref<88x512xf32, #tpu.memory_space<vmem>>, vector<88x512xf32>
    %cst_30 = arith.constant dense<0.000000e+00> : vector<8x512xf32>
    %51 = tpu.matmul %49, %50, %cst_30 {dimension_numbers = #tpu.dot_dimension_numbers<[1], [0], [0], [1], [0, 0, 1, 1], [], []>} : vector<8x88xf32>, vector<88x512xf32>, vector<8x512xf32> -> vector<8x512xf32>
    %c0_31 = arith.constant 0 : index
    %c0_32 = arith.constant 0 : index
    %52 = vector.load %arg5[%c0_31, %c0_32] : memref<8x512xf32, #tpu.memory_space<vmem>>, vector<8x512xf32>
    tpu.vector_store %arg5[%c0_31, %c0_32], %51 {strides = array<i32>} : memref<8x512xf32, #tpu.memory_space<vmem>>, vector<8x512xf32>,
    %53 = arith.mulf %51, %51 : vector<8x512xf32>
    %cst_33 = arith.constant dense<0.000000e+00> : vector<512xf32>
    %54 = vector.multi_reduction <add>, %53, %cst_33 [0] : vector<8x512xf32> to vector<512xf32>
    %55 = vector.shape_cast %54 : vector<512xf32> to vector<1x512xf32>
    %c0_34 = arith.constant 0 : index
    %c0_35 = arith.constant 0 : index
    %56 = vector.load %arg6[%c0_34, %c0_35] : memref<1x512xf32, #tpu.memory_space<vmem>>, vector<1x512xf32>
    tpu.vector_store %arg6[%c0_34, %c0_35], %55 {strides = array<i32>} : memref<1x512xf32, #tpu.memory_space<vmem>>, vector<1x512xf32>,
    return
  }
  func.func @transform_0(%arg0: i32) -> i32 {
    %c0_i32 = arith.constant 0 : i32
    %c0_i32_0 = arith.constant 0 : i32
    return %c0_i32 : i32
  }
  func.func @transform_1(%arg0: i32) -> (i32, i32) {
    %c0_i32 = arith.constant 0 : i32
    %c0_i32_0 = arith.constant 0 : i32
    return %c0_i32, %arg0 : i32, i32
  }
  func.func @transform_2(%arg0: i32) -> (i32, i32) {
    %c0_i32 = arith.constant 0 : i32
    %c0_i32_0 = arith.constant 0 : i32
    %c0_i32_1 = arith.constant 0 : i32
    return %c0_i32, %c0_i32_0 : i32, i32
  }
  func.func @transform_3(%arg0: i32) -> (i32, i32) {
    %c0_i32 = arith.constant 0 : i32
    %c0_i32_0 = arith.constant 0 : i32
    %c0_i32_1 = arith.constant 0 : i32
    return %c0_i32, %c0_i32_0 : i32, i32
  }
  func.func @transform_4(%arg0: i32) -> (i32, i32) {
    %c0_i32 = arith.constant 0 : i32
    %c0_i32_0 = arith.constant 0 : i32
    return %c0_i32, %arg0 : i32, i32
  }
  func.func @transform_5(%arg0: i32) -> (i32, i32) {
    %c0_i32 = arith.constant 0 : i32
    %c0_i32_0 = arith.constant 0 : i32
    return %c0_i32, %arg0 : i32, i32
  }
}

</mosaic_0001>

<llo_original>
// kernel: tpu_custom_call.1
$region0: #{tpu_custom_call.1}
  #allocation0 [shape = 'u32[]', space=smem, size = 0x4, offset = 0x4, fixed_abs, tag = 'smem constant byte address 0x4 - core index']
  #allocation1 [shape = 'u32[144,128]{1,0:T(1,128)}', space=vmem, size = 0x12000, scoped, tag = 'internal scratch']
  #allocation2 [shape = 'f32[88,512]{1,0:T(8,128)}', space=vmem, size = 0x2c000, scoped, tag = 'scratch operand']
  #allocation3 [shape = 'f32[1]{0:T(128)S(6)}', space=smem, size = 0x200, scoped, tag = 'scoped memory for tpu_custom_call.1']
  %s0 = inlined_call_operand.<no memory space> [shape: f32[1], index: 0, kind: input, shape index: {}]
  %s1 = inlined_call_operand.hbm [shape: f32[8,512], index: 1, kind: input, shape index: {}]
  %s2 = inlined_call_operand.hbm [shape: f32[8,88], index: 2, kind: input, shape index: {}]
  %s3 = inlined_call_operand.hbm [shape: f32[9,512], index: 3, kind: input, shape index: {}]
  %s4 = inlined_call_operand.hbm [shape: f32[8,512], index: 4, kind: output, shape index: {0}]
  %s5 = inlined_call_operand.hbm [shape: f32[1,512], index: 5, kind: output, shape index: {1}]
  %6 = xla_tuple %s4, %s5
  %s7 = sld [smem:[#allocation0]]
  $region46: #{tpu_custom_call.1} parent=0
    _
  %s9 = ssub.s32 1, %s7
  %s10 = scalar_select 0, %s9, %s7
  %11 = sst [smem:[#allocation3]] %s0
  $region1: #{tpu_custom_call.1} parent=0
    #allocation4 [shape = 'u8[16384]{0}', space=vmem, size = 0x4000, scoped, tag = 'input window, operand 1, single buffered']
    #allocation5 [shape = 's32[1]{0}', space=sflag, size = 0x4, scoped, tag = 'scoped memory for tpu_custom_call.1']
    #allocation6 [shape = 's32[1]{0}', space=sflag, size = 0x4, scoped, tag = 'scoped memory for tpu_custom_call.1']
    #allocation7 [shape = 'u8[4096]{0}', space=vmem, size = 0x1000, scoped, tag = 'input window, operand 2, single buffered']
    #allocation8 [shape = 's32[1]{0}', space=sflag, size = 0x4, scoped, tag = 'scoped memory for tpu_custom_call.1']
    #allocation9 [shape = 'u8[32768]{0}', space=vmem, size = 0x8000, scoped, tag = 'input window, operand 3, single buffered']
    #allocation10 [shape = 'u8[16384]{0}', space=vmem, size = 0x4000, scoped, tag = 'output window, operand 0, single buffered']
    #allocation11 [shape = 'u8[2048]{0}', space=vmem, size = 0x800, scoped, tag = 'output window, operand 1, single buffered']
    #allocation12 [shape = 's32[1]{0}', space=sflag, size = 0x4, scoped, tag = 'scoped memory for tpu_custom_call.1']
    %12 = vsyncpa [#allocation5], 0
    %13 = vsyncpa [#allocation8], 0
    %14 = vsyncpa [#allocation6], 0
    %15 = vsyncpa [#allocation12], 0
    // Predicated region
    $region2: #{tpu_custom_call.1} parent=1 // pred_check
      _
    $region3: #{tpu_custom_call.1} parent=1 // pred_check_branch
      %17 = sbr.rel (0) target = $region5
    $region4: #{tpu_custom_call.1} parent=1 // pred_region
      _
    $region5: #{tpu_custom_call.1} parent=1 // pred_fallthru
      _
    // Predicated region
    $region6: #{tpu_custom_call.1} parent=1 // pred_check
      _
    $region7: #{tpu_custom_call.1} parent=1 // pred_check_branch
      %19 = sbr.rel (0) target = $region9
    $region8: #{tpu_custom_call.1} parent=1 // pred_region
      %s21 = ssub.s32 512, 512
      %22 = vsyncadd [#allocation5], %s21
      %s24 = sshll.u32 [#allocation4], 4
      %s25 = int_to_ptr.vmem [resolvable:$true] %s24
      %27 = dma.hbm_to_vmem [thread:$0]  %s1, 512, %s25, [#allocation5]
    $region9: #{tpu_custom_call.1} parent=1 // pred_fallthru
      _
    // Predicated region
    $region10: #{tpu_custom_call.1} parent=1 // pred_check
      _
    $region11: #{tpu_custom_call.1} parent=1 // pred_check_branch
      %29 = sbr.rel (0) target = $region13
    $region12: #{tpu_custom_call.1} parent=1 // pred_region
      %s31 = ssub.s32 128, 128
      %32 = vsyncadd [#allocation8], %s31
      %s34 = sshll.u32 [#allocation7], 4
      %s35 = int_to_ptr.vmem [resolvable:$true] %s34
      %37 = dma.hbm_to_vmem [thread:$0]  %s2, 128, %s35, [#allocation8]
    $region13: #{tpu_custom_call.1} parent=1 // pred_fallthru
      _
    // Predicated region
    $region14: #{tpu_custom_call.1} parent=1 // pred_check
      _
    $region15: #{tpu_custom_call.1} parent=1 // pred_check_branch
      %39 = sbr.rel (0) target = $region17
    $region16: #{tpu_custom_call.1} parent=1 // pred_region
      %s41 = ssub.s32 1024, 1024
      %42 = vsyncadd [#allocation8], %s41
      %s43 = sshll.u32 [#allocation9], 4
      %s44 = int_to_ptr.vmem [resolvable:$true] %s43
      %49 = dma.hbm_to_vmem [thread:$0]  %s3, 1024, %s44, [#allocation8], 512, 512, 32
    $region17: #{tpu_custom_call.1} parent=1 // pred_fallthru
      _
    // Predicated region
    $region18: #{tpu_custom_call.1} parent=1 // pred_check
      _
    $region19: #{tpu_custom_call.1} parent=1 // pred_check_branch
      %51 = sbr.rel (0) target = $region21
    $region20: #{tpu_custom_call.1} parent=1 // pred_region
      %52 = dma.done [#allocation5], 512
    $region21: #{tpu_custom_call.1} parent=1 // pred_fallthru
      _
    // Predicated region
    $region22: #{tpu_custom_call.1} parent=1 // pred_check
      _
    $region23: #{tpu_custom_call.1} parent=1 // pred_check_branch
      %54 = sbr.rel (0) target = $region25
    $region24: #{tpu_custom_call.1} parent=1 // pred_region
      %55 = dma.done [#allocation8], 128
    $region25: #{tpu_custom_call.1} parent=1 // pred_fallthru
      _
    // Predicated region
    $region26: #{tpu_custom_call.1} parent=1 // pred_check
      _
    $region27: #{tpu_custom_call.1} parent=1 // pred_check_branch
      %57 = sbr.rel (0) target = $region29
    $region28: #{tpu_custom_call.1} parent=1 // pred_region
      %58 = dma.done [#allocation8], 1024
    $region29: #{tpu_custom_call.1} parent=1 // pred_fallthru
      _
    %s59 = sld [smem:[#allocation3]]
    %v60 = vld [vmem:[#allocation9] sm:$0xff]
    %v61 = vld [vmem:[#allocation9 + $0x8] sm:$0xff]
    %v62 = vld [vmem:[#allocation9 + $0x10] sm:$0xff]
    %v63 = vld [vmem:[#allocation9 + $0x18] sm:$0xff]
    %v64 = vld [vmem:[#allocation9 + $0x20] sm:$0x1]
    %v65 = vld [vmem:[#allocation9 + $0x28] sm:$0x1]
    %v66 = vld [vmem:[#allocation9 + $0x30] sm:$0x1]
    %v67 = vld [vmem:[#allocation9 + $0x38] sm:$0x1]
    %v68 = vstv %s59
    %v69 = vmul.f32 %v60, %v68
    %v70 = vmul.f32 %v61, %v68
    %v71 = vmul.f32 %v62, %v68
    %v72 = vmul.f32 %v63, %v68
    %v73 = vmul.f32 %v64, %v68
    %v74 = vmul.f32 %v65, %v68
    %v75 = vmul.f32 %v66, %v68
    %v76 = vmul.f32 %v67, %v68
    %77 = vst [vmem:[#allocation2 + $0x120] sm:$0xff] %v69
    %78 = vst [vmem:[#allocation2 + $0x128] sm:$0xff] %v70
    %79 = vst [vmem:[#allocation2 + $0x130] sm:$0xff] %v71
    %80 = vst [vmem:[#allocation2 + $0x138] sm:$0xff] %v72
    %81 = vst [vmem:[#allocation2 + $0x140] sm:$0x1] %v73
    %82 = vst [vmem:[#allocation2 + $0x148] sm:$0x1] %v74
    %83 = vst [vmem:[#allocation2 + $0x150] sm:$0x1] %v75
    %84 = vst [vmem:[#allocation2 + $0x158] sm:$0x1] %v76
    %85 = vst [vmem:[#allocation2 + $0x140] sm:$0xfe] 1.0
    %86 = vst [vmem:[#allocation2 + $0x148] sm:$0xfe] 1.0
    %87 = vst [vmem:[#allocation2 + $0x150] sm:$0xfe] 1.0
    %88 = vst [vmem:[#allocation2 + $0x158] sm:$0xfe] 1.0
    %v89 = vld [vmem:[#allocation4] sm:$0xff]
    %v90 = vld [vmem:[#allocation4 + $0x8] sm:$0xff]
    %v91 = vld [vmem:[#allocation4 + $0x10] sm:$0xff]
    %v92 = vld [vmem:[#allocation4 + $0x18] sm:$0xff]
    %93 = vrot.lane.b32.xlu0 %v89, 17
    %v94 = vpop.permute.xlu0 %93
    %95 = vrot.lane.b32.xlu0 %v90, 17
    %v96 = vpop.permute.xlu0 %95
    %97 = vrot.lane.b32.xlu0 %v91, 17
    %v98 = vpop.permute.xlu0 %97
    %99 = vrot.lane.b32.xlu0 %v92, 17
    %v100 = vpop.permute.xlu0 %99
    %v101 = vlaneseq
    %v102 = vand.u32 %v101, 127
    %vm103 = vcmp.lt.s32.totalorder %v102, 17
    %v104 = vsel %vm103, %v98, %v100
    %v105 = vsel %vm103, %v96, %v98
    %v106 = vsel %vm103, %v94, %v96
    %v107 = vsel %vm103, %v100, %v94
    %v108 = vld [vmem:[#allocation9] ss:$8 sm:$0xf]
    %v110 = vlaneseq
    %v111 = vshrl.u32 %v110, 7
    %v112 = vsub.s32 0, %v111
    %v113 = vrot.slane %v108, %v112
    %v114 = vlaneseq
    %v115 = vshrl.u32 %v114, 7
    %v116 = vsub.s32 1, %v115
    %v117 = vrot.slane %v108, %v116
    %v118 = vlaneseq
    %v119 = vshrl.u32 %v118, 7
    %v120 = vsub.s32 2, %v119
    %v121 = vrot.slane %v108, %v120
    %v122 = vlaneseq
    %v123 = vshrl.u32 %v122, 7
    %v124 = vsub.s32 3, %v123
    %v125 = vrot.slane %v108, %v124
    %v130 = vmul.f32 %v107, %v113
    %v131 = vmul.f32 %v106, %v117
    %v132 = vmul.f32 %v105, %v121
    %v133 = vmul.f32 %v104, %v125
    %134 = vst [vmem:[#allocation2] sm:$0xff] %v130
    %135 = vst [vmem:[#allocation2 + $0x8] sm:$0xff] %v131
    %136 = vst [vmem:[#allocation2 + $0x10] sm:$0xff] %v132
    %137 = vst [vmem:[#allocation2 + $0x18] sm:$0xff] %v133
    %138 = vrot.lane.b32.xlu0 %v89, 16
    %v139 = vpop.permute.xlu0 %138
    %140 = vrot.lane.b32.xlu0 %v90, 16
    %v141 = vpop.permute.xlu0 %140
    %142 = vrot.lane.b32.xlu0 %v91, 16
    %v143 = vpop.permute.xlu0 %142
    %144 = vrot.lane.b32.xlu0 %v92, 16
    %v145 = vpop.permute.xlu0 %144
    %vm146 = vcmp.lt.s32.totalorder %v102, 16
    %v147 = vsel %vm146, %v143, %v145
    %v148 = vsel %vm146, %v141, %v143
    %v149 = vsel %vm146, %v139, %v141
    %v150 = vsel %vm146, %v145, %v139
    %s151 = scalar_lea.vmem [#allocation9], 1
    %v152 = vld [vmem:[%s151] ss:$8 sm:$0xf]
    %v154 = vlaneseq
    %v155 = vshrl.u32 %v154, 7
    %v156 = vsub.s32 0, %v155
    %v157 = vrot.slane %v152, %v156
    %v158 = vlaneseq
    %v159 = vshrl.u32 %v158, 7
    %v160 = vsub.s32 1, %v159
    %v161 = vrot.slane %v152, %v160
    %v162 = vlaneseq
    %v163 = vshrl.u32 %v162, 7
    %v164 = vsub.s32 2, %v163
    %v165 = vrot.slane %v152, %v164
    %v166 = vlaneseq
    %v167 = vshrl.u32 %v166, 7
    %v168 = vsub.s32 3, %v167
    %v169 = vrot.slane %v152, %v168
    %v174 = vmul.f32 %v150, %v157
    %v175 = vmul.f32 %v149, %v161
    %v176 = vmul.f32 %v148, %v165
    %v177 = vmul.f32 %v147, %v169
    %178 = vst [vmem:[#allocation2 + $0x20] sm:$0xff] %v174
    %179 = vst [vmem:[#allocation2 + $0x28] sm:$0xff] %v175
    %180 = vst [vmem:[#allocation2 + $0x30] sm:$0xff] %v176
    %181 = vst [vmem:[#allocation2 + $0x38] sm:$0xff] %v177
    %182 = vrot.lane.b32.xlu0 %v89, 15
    %v183 = vpop.permute.xlu0 %182
    %184 = vrot.lane.b32.xlu0 %v90, 15
    %v185 = vpop.permute.xlu0 %184
    %186 = vrot.lane.b32.xlu0 %v91, 15
    %v187 = vpop.permute.xlu0 %186
    %188 = vrot.lane.b32.xlu0 %v92, 15
    %v189 = vpop.permute.xlu0 %188
    %vm190 = vcmp.lt.s32.totalorder %v102, 15
    %v191 = vsel %vm190, %v187, %v189
    %v192 = vsel %vm190, %v185, %v187
    %v193 = vsel %vm190, %v183, %v185
    %v194 = vsel %vm190, %v189, %v183
    %s195 = scalar_lea.vmem [#allocation9], 2
    %v196 = vld [vmem:[%s195] ss:$8 sm:$0xf]
    %v198 = vlaneseq
    %v199 = vshrl.u32 %v198, 7
    %v200 = vsub.s32 0, %v199
    %v201 = vrot.slane %v196, %v200
    %v202 = vlaneseq
    %v203 = vshrl.u32 %v202, 7
    %v204 = vsub.s32 1, %v203
    %v205 = vrot.slane %v196, %v204
    %v206 = vlaneseq
    %v207 = vshrl.u32 %v206, 7
    %v208 = vsub.s32 2, %v207
    %v209 = vrot.slane %v196, %v208
    %v210 = vlaneseq
    %v211 = vshrl.u32 %v210, 7
    %v212 = vsub.s32 3, %v211
    %v213 = vrot.slane %v196, %v212
    %v218 = vmul.f32 %v194, %v201
    %v219 = vmul.f32 %v193, %v205
    %v220 = vmul.f32 %v192, %v209
    %v221 = vmul.f32 %v191, %v213
    %222 = vst [vmem:[#allocation2 + $0x40] sm:$0xff] %v218
    %223 = vst [vmem:[#allocation2 + $0x48] sm:$0xff] %v219
    %224 = vst [vmem:[#allocation2 + $0x50] sm:$0xff] %v220
    %225 = vst [vmem:[#allocation2 + $0x58] sm:$0xff] %v221
    %226 = vrot.lane.b32.xlu0 %v89, 1
    %v227 = vpop.permute.xlu0 %226
    %228 = vrot.lane.b32.xlu0 %v90, 1
    %v229 = vpop.permute.xlu0 %228
    %230 = vrot.lane.b32.xlu0 %v91, 1
    %v231 = vpop.permute.xlu0 %230
    %232 = vrot.lane.b32.xlu0 %v92, 1
    %v233 = vpop.permute.xlu0 %232
    %vm234 = vcmp.lt.s32.totalorder %v102, 1
    %v235 = vsel %vm234, %v231, %v233
    %v236 = vsel %vm234, %v229, %v231
    %v237 = vsel %vm234, %v227, %v229
    %v238 = vsel %vm234, %v233, %v227
    %s239 = scalar_lea.vmem [#allocation9], 3
    %v240 = vld [vmem:[%s239] ss:$8 sm:$0xf]
    %v242 = vlaneseq
    %v243 = vshrl.u32 %v242, 7
    %v244 = vsub.s32 0, %v243
    %v245 = vrot.slane %v240, %v244
    %v246 = vlaneseq
    %v247 = vshrl.u32 %v246, 7
    %v248 = vsub.s32 1, %v247
    %v249 = vrot.slane %v240, %v248
    %v250 = vlaneseq
    %v251 = vshrl.u32 %v250, 7
    %v252 = vsub.s32 2, %v251
    %v253 = vrot.slane %v240, %v252
    %v254 = vlaneseq
    %v255 = vshrl.u32 %v254, 7
    %v256 = vsub.s32 3, %v255
    %v257 = vrot.slane %v240, %v256
    %v262 = vmul.f32 %v238, %v245
    %v263 = vmul.f32 %v237, %v249
    %v264 = vmul.f32 %v236, %v253
    %v265 = vmul.f32 %v235, %v257
    %266 = vst [vmem:[#allocation2 + $0x60] sm:$0xff] %v262
    %267 = vst [vmem:[#allocation2 + $0x68] sm:$0xff] %v263
    %268 = vst [vmem:[#allocation2 + $0x70] sm:$0xff] %v264
    %269 = vst [vmem:[#allocation2 + $0x78] sm:$0xff] %v265
    %270 = vst [vmem:[#allocation2 + $0x80] sm:$0xff] %v89
    %271 = vst [vmem:[#allocation2 + $0x88] sm:$0xff] %v90
    %272 = vst [vmem:[#allocation2 + $0x90] sm:$0xff] %v91
    %273 = vst [vmem:[#allocation2 + $0x98] sm:$0xff] %v92
    %274 = vrot.lane.b32.xlu0 %v89, 127
    %v275 = vpop.permute.xlu0 %274
    %276 = vrot.lane.b32.xlu0 %v90, 127
    %v277 = vpop.permute.xlu0 %276
    %278 = vrot.lane.b32.xlu0 %v91, 127
    %v279 = vpop.permute.xlu0 %278
    %280 = vrot.lane.b32.xlu0 %v92, 127
    %v281 = vpop.permute.xlu0 %280
    %vm282 = vcmp.lt.s32.totalorder %v102, 127
    %v283 = vsel %vm282, %v279, %v281
    %v284 = vsel %vm282, %v277, %v279
    %v285 = vsel %vm282, %v275, %v277
    %v286 = vsel %vm282, %v281, %v275
    %s287 = scalar_lea.vmem [#allocation9], 5
    %v288 = vld [vmem:[%s287] ss:$8 sm:$0xf]
    %v290 = vlaneseq
    %v291 = vshrl.u32 %v290, 7
    %v292 = vsub.s32 0, %v291
    %v293 = vrot.slane %v288, %v292
    %v294 = vlaneseq
    %v295 = vshrl.u32 %v294, 7
    %v296 = vsub.s32 1, %v295
    %v297 = vrot.slane %v288, %v296
    %v298 = vlaneseq
    %v299 = vshrl.u32 %v298, 7
    %v300 = vsub.s32 2, %v299
    %v301 = vrot.slane %v288, %v300
    %v302 = vlaneseq
    %v303 = vshrl.u32 %v302, 7
    %v304 = vsub.s32 3, %v303
    %v305 = vrot.slane %v288, %v304
    %v310 = vmul.f32 %v285, %v293
    %v311 = vmul.f32 %v284, %v297
    %v312 = vmul.f32 %v283, %v301
    %v313 = vmul.f32 %v286, %v305
    %314 = vst [vmem:[#allocation2 + $0xa0] sm:$0xff] %v310
    %315 = vst [vmem:[#allocation2 + $0xa8] sm:$0xff] %v311
    %316 = vst [vmem:[#allocation2 + $0xb0] sm:$0xff] %v312
    %317 = vst [vmem:[#allocation2 + $0xb8] sm:$0xff] %v313
    %318 = vrot.lane.b32.xlu0 %v89, 113
    %v319 = vpop.permute.xlu0 %318
    %320 = vrot.lane.b32.xlu0 %v90, 113
    %v321 = vpop.permute.xlu0 %320
    %322 = vrot.lane.b32.xlu0 %v91, 113
    %v323 = vpop.permute.xlu0 %322
    %324 = vrot.lane.b32.xlu0 %v92, 113
    %v325 = vpop.permute.xlu0 %324
    %vm326 = vcmp.lt.s32.totalorder %v102, 113
    %v327 = vsel %vm326, %v323, %v325
    %v328 = vsel %vm326, %v321, %v323
    %v329 = vsel %vm326, %v319, %v321
    %v330 = vsel %vm326, %v325, %v319
    %s331 = scalar_lea.vmem [#allocation9], 6
    %v332 = vld [vmem:[%s331] ss:$8 sm:$0xf]
    %v334 = vlaneseq
    %v335 = vshrl.u32 %v334, 7
    %v336 = vsub.s32 0, %v335
    %v337 = vrot.slane %v332, %v336
    %v338 = vlaneseq
    %v339 = vshrl.u32 %v338, 7
    %v340 = vsub.s32 1, %v339
    %v341 = vrot.slane %v332, %v340
    %v342 = vlaneseq
    %v343 = vshrl.u32 %v342, 7
    %v344 = vsub.s32 2, %v343
    %v345 = vrot.slane %v332, %v344
    %v346 = vlaneseq
    %v347 = vshrl.u32 %v346, 7
    %v348 = vsub.s32 3, %v347
    %v349 = vrot.slane %v332, %v348
    %v354 = vmul.f32 %v329, %v337
    %v355 = vmul.f32 %v328, %v341
    %v356 = vmul.f32 %v327, %v345
    %v357 = vmul.f32 %v330, %v349
    %358 = vst [vmem:[#allocation2 + $0xc0] sm:$0xff] %v354
    %359 = vst [vmem:[#allocation2 + $0xc8] sm:$0xff] %v355
    %360 = vst [vmem:[#allocation2 + $0xd0] sm:$0xff] %v356
    %361 = vst [vmem:[#allocation2 + $0xd8] sm:$0xff] %v357
    %362 = vrot.lane.b32.xlu0 %v89, 112
    %v363 = vpop.permute.xlu0 %362
    %364 = vrot.lane.b32.xlu0 %v90, 112
    %v365 = vpop.permute.xlu0 %364
    %366 = vrot.lane.b32.xlu0 %v91, 112
    %v367 = vpop.permute.xlu0 %366
    %368 = vrot.lane.b32.xlu0 %v92, 112
    %v369 = vpop.permute.xlu0 %368
    %vm370 = vcmp.lt.s32.totalorder %v102, 112
    %v371 = vsel %vm370, %v367, %v369
    %v372 = vsel %vm370, %v365, %v367
    %v373 = vsel %vm370, %v363, %v365
    %v374 = vsel %vm370, %v369, %v363
    %s375 = scalar_lea.vmem [#allocation9], 7
    %v376 = vld [vmem:[%s375] ss:$8 sm:$0xf]
    %v378 = vlaneseq
    %v379 = vshrl.u32 %v378, 7
    %v380 = vsub.s32 0, %v379
    %v381 = vrot.slane %v376, %v380
    %v382 = vlaneseq
    %v383 = vshrl.u32 %v382, 7
    %v384 = vsub.s32 1, %v383
    %v385 = vrot.slane %v376, %v384
    %v386 = vlaneseq
    %v387 = vshrl.u32 %v386, 7
    %v388 = vsub.s32 2, %v387
    %v389 = vrot.slane %v376, %v388
    %v390 = vlaneseq
    %v391 = vshrl.u32 %v390, 7
    %v392 = vsub.s32 3, %v391
    %v393 = vrot.slane %v376, %v392
    %v398 = vmul.f32 %v373, %v381
    %v399 = vmul.f32 %v372, %v385
    %v400 = vmul.f32 %v371, %v389
    %v401 = vmul.f32 %v374, %v393
    %402 = vst [vmem:[#allocation2 + $0xe0] sm:$0xff] %v398
    %403 = vst [vmem:[#allocation2 + $0xe8] sm:$0xff] %v399
    %404 = vst [vmem:[#allocation2 + $0xf0] sm:$0xff] %v400
    %405 = vst [vmem:[#allocation2 + $0xf8] sm:$0xff] %v401
    %406 = vrot.lane.b32.xlu0 %v89, 111
    %v407 = vpop.permute.xlu0 %406
    %408 = vrot.lane.b32.xlu0 %v90, 111
    %v409 = vpop.permute.xlu0 %408
    %410 = vrot.lane.b32.xlu0 %v91, 111
    %v411 = vpop.permute.xlu0 %410
    %412 = vrot.lane.b32.xlu0 %v92, 111
    %v413 = vpop.permute.xlu0 %412
    %vm414 = vcmp.lt.s32.totalorder %v102, 111
    %v415 = vsel %vm414, %v411, %v413
    %v416 = vsel %vm414, %v409, %v411
    %v417 = vsel %vm414, %v407, %v409
    %v418 = vsel %vm414, %v413, %v407
    %s419 = scalar_lea.vmem [#allocation9], 32
    %v420 = vld [vmem:[%s419] ss:$8 sm:$0xf]
    %v422 = vlaneseq
    %v423 = vshrl.u32 %v422, 7
    %v424 = vsub.s32 0, %v423
    %v425 = vrot.slane %v420, %v424
    %v426 = vlaneseq
    %v427 = vshrl.u32 %v426, 7
    %v428 = vsub.s32 1, %v427
    %v429 = vrot.slane %v420, %v428
    %v430 = vlaneseq
    %v431 = vshrl.u32 %v430, 7
    %v432 = vsub.s32 2, %v431
    %v433 = vrot.slane %v420, %v432
    %v434 = vlaneseq
    %v435 = vshrl.u32 %v434, 7
    %v436 = vsub.s32 3, %v435
    %v437 = vrot.slane %v420, %v436
    %v442 = vmul.f32 %v417, %v425
    %v443 = vmul.f32 %v416, %v429
    %v444 = vmul.f32 %v415, %v433
    %v445 = vmul.f32 %v418, %v437
    %446 = vst [vmem:[#allocation2 + $0x100] sm:$0xff] %v442
    %447 = vst [vmem:[#allocation2 + $0x108] sm:$0xff] %v443
    %448 = vst [vmem:[#allocation2 + $0x110] sm:$0xff] %v444
    %449 = vst [vmem:[#allocation2 + $0x118] sm:$0xff] %v445
    %v450 = vld [vmem:[#allocation7] sm:$0xff]
    %v451 = vld [vmem:[#allocation2] sm:$0xff]
    %v452 = vld [vmem:[#allocation2 + $0x8] sm:$0xff]
    %v453 = vld [vmem:[#allocation2 + $0x10] sm:$0xff]
    %v454 = vld [vmem:[#allocation2 + $0x18] sm:$0xff]
    %v455 = vld [vmem:[#allocation2 + $0x20] sm:$0xff]
    %v456 = vld [vmem:[#allocation2 + $0x28] sm:$0xff]
    %v457 = vld [vmem:[#allocation2 + $0x30] sm:$0xff]
    %v458 = vld [vmem:[#allocation2 + $0x38] sm:$0xff]
    %v459 = vld [vmem:[#allocation2 + $0x40] sm:$0xff]
    %v460 = vld [vmem:[#allocation2 + $0x48] sm:$0xff]
    %v461 = vld [vmem:[#allocation2 + $0x50] sm:$0xff]
    %v462 = vld [vmem:[#allocation2 + $0x58] sm:$0xff]
    %v463 = vld [vmem:[#allocation2 + $0x60] sm:$0xff]
    %v464 = vld [vmem:[#allocation2 + $0x68] sm:$0xff]
    %v465 = vld [vmem:[#allocation2 + $0x70] sm:$0xff]
    %v466 = vld [vmem:[#allocation2 + $0x78] sm:$0xff]
    %v467 = vld [vmem:[#allocation2 + $0x80] sm:$0xff]
    %v468 = vld [vmem:[#allocation2 + $0x88] sm:$0xff]
    %v469 = vld [vmem:[#allocation2 + $0x90] sm:$0xff]
    %v470 = vld [vmem:[#allocation2 + $0x98] sm:$0xff]
    %v471 = vld [vmem:[#allocation2 + $0xa0] sm:$0xff]
    %v472 = vld [vmem:[#allocation2 + $0xa8] sm:$0xff]
    %v473 = vld [vmem:[#allocation2 + $0xb0] sm:$0xff]
    %v474 = vld [vmem:[#allocation2 + $0xb8] sm:$0xff]
    %v475 = vld [vmem:[#allocation2 + $0xc0] sm:$0xff]
    %v476 = vld [vmem:[#allocation2 + $0xc8] sm:$0xff]
    %v477 = vld [vmem:[#allocation2 + $0xd0] sm:$0xff]
    %v478 = vld [vmem:[#allocation2 + $0xd8] sm:$0xff]
    %v479 = vld [vmem:[#allocation2 + $0xe0] sm:$0xff]
    %v480 = vld [vmem:[#allocation2 + $0xe8] sm:$0xff]
    %v481 = vld [vmem:[#allocation2 + $0xf0] sm:$0xff]
    %v482 = vld [vmem:[#allocation2 + $0xf8] sm:$0xff]
    %v483 = vld [vmem:[#allocation2 + $0x100] sm:$0xff]
    %v484 = vld [vmem:[#allocation2 + $0x108] sm:$0xff]
    %v485 = vld [vmem:[#allocation2 + $0x110] sm:$0xff]
    %v486 = vld [vmem:[#allocation2 + $0x118] sm:$0xff]
    %v487 = vld [vmem:[#allocation2 + $0x120] sm:$0xff]
    %v488 = vld [vmem:[#allocation2 + $0x128] sm:$0xff]
    %v489 = vld [vmem:[#allocation2 + $0x130] sm:$0xff]
    %v490 = vld [vmem:[#allocation2 + $0x138] sm:$0xff]
    %v491 = vld [vmem:[#allocation2 + $0x140] sm:$0xff]
    %v492 = vld [vmem:[#allocation2 + $0x148] sm:$0xff]
    %v493 = vld [vmem:[#allocation2 + $0x150] sm:$0xff]
    %v494 = vld [vmem:[#allocation2 + $0x158] sm:$0xff]
    %vm495 = vcmask 719872
    %v497 = vsel %vm495, %v450, 0
    %499 = vmatprep.subr.mxu0 %v452
    %500 = vmatpush1.msra.mxu0 %v451
    %501 = vmatprep.subr.mxu0 %v456
    %502 = vmatpush1.msra.mxu0 %v455
    %503 = vmatprep.subr.mxu0 %v460
    %504 = vmatpush1.msra.mxu0 %v459
    %505 = vmatprep.subr.mxu0 %v464
    %506 = vmatpush1.msra.mxu0 %v463
    %507 = vmatprep.subr.mxu0 %v468
    %508 = vmatpush1.msra.mxu0 %v467
    %509 = vmatprep.subr.mxu0 %v472
    %510 = vmatpush1.msra.mxu0 %v471
    %511 = vmatprep.subr.mxu0 %v476
    %512 = vmatpush1.msra.mxu0 %v475
    %513 = vmatprep.subr.mxu0 %v480
    %514 = vmatpush1.msra.mxu0 %v479
    %515 = vmatprep.subr.mxu0 %v484
    %516 = vmatpush1.msra.mxu0 %v483
    %517 = vmatprep.subr.mxu0 %v488
    %518 = vmatpush1.msra.mxu0 %v487
    %519 = vmatprep.subr.mxu0 %v492
    %520 = vmatpush1.msra.mxu0 %v491
    %521 = vmatprep.subr.mxu0 0.0
    %522 = vmatpush1.msra.mxu0 0.0
    %523 = vmatprep.subr.mxu0 0.0
    %524 = vmatpush1.msra.mxu0 0.0
    %525 = vmatprep.subr.mxu0 0.0
    %526 = vmatpush1.msra.mxu0 0.0
    %527 = vmatprep.subr.mxu0 0.0
    %528 = vmatpush1.msra.mxu0 0.0
    %529 = vmatprep.subr.mxu0 0.0
    %530 = vmatpush1.msra.mxu0 0.0
    %531 = vmatprep.subr.mxu0 0.0
    %532 = vmatpush1.msra.mxu0 0.0
    %533 = vmatprep.subr.mxu0 0.0
    %534 = vmatpush1.msra.mxu0 0.0
    %535 = vmatprep.subr.mxu0 0.0
    %536 = vmatpush1.msra.mxu0 0.0
    %537 = vmatprep.subr.mxu0 0.0
    %538 = vmatpush1.msra.mxu0 0.0
    %539 = vmatprep.subr.mxu0 0.0
    %540 = vmatpush1.msra.mxu0 0.0
    %541 = vmatprep.subr.mxu0 0.0
    %542 = vmatpush1.msra.mxu0 0.0
    %543 = vmatprep.subr.mxu0 0.0
    %544 = vmatpush1.msra.mxu0 0.0
    %545 = vmatprep.subr.mxu0 0.0
    %546 = vmatpush1.msra.mxu0 0.0
    %547 = vmatprep.subr.mxu0 0.0
    %548 = vmatpush1.msra.mxu0 0.0
    %549 = vmatprep.subr.mxu0 0.0
    %550 = vmatpush1.msra.mxu0 0.0
    %551 = vmatprep.subr.mxu0 0.0
    %552 = vmatpush1.msra.mxu0 0.0
    %553 = vmatprep.subr.mxu0 0.0
    %554 = vmatpush1.msra.mxu0 0.0
    %555 = vmatprep.subr.mxu0 0.0
    %556 = vmatpush1.msra.mxu0 0.0
    %557 = vmatprep.subr.mxu0 0.0
    %558 = vmatpush1.msra.mxu0 0.0
    %559 = vmatprep.subr.mxu0 0.0
    %560 = vmatpush1.msra.mxu0 0.0
    %561 = vmatprep.subr.mxu0 0.0
    %562 = vmatpush1.msra.mxu0 0.0
    %563 = vmatprep.mubr.f32.mxu0 0.0
    %564 = vmatmul.mubr.f32.gmra.mrb[0].mxu0 %v497
    %v565 = vpop.f32.mrb[0].mxu0
    %v566 = vadd.f32 0.0, %v565
    %v567 = vpop.f32.mrb[0].mxu0
    %v568 = vadd.f32 0.0, %v567
    %569 = vdwg.mxu0
    %570 = vmatprep.subr.mxu0 %v454
    %571 = vmatpush1.msra.mxu0 %v453
    %572 = vmatprep.subr.mxu0 %v458
    %573 = vmatpush1.msra.mxu0 %v457
    %574 = vmatprep.subr.mxu0 %v462
    %575 = vmatpush1.msra.mxu0 %v461
    %576 = vmatprep.subr.mxu0 %v466
    %577 = vmatpush1.msra.mxu0 %v465
    %578 = vmatprep.subr.mxu0 %v470
    %579 = vmatpush1.msra.mxu0 %v469
    %580 = vmatprep.subr.mxu0 %v474
    %581 = vmatpush1.msra.mxu0 %v473
    %582 = vmatprep.subr.mxu0 %v478
    %583 = vmatpush1.msra.mxu0 %v477
    %584 = vmatprep.subr.mxu0 %v482
    %585 = vmatpush1.msra.mxu0 %v481
    %586 = vmatprep.subr.mxu0 %v486
    %587 = vmatpush1.msra.mxu0 %v485
    %588 = vmatprep.subr.mxu0 %v490
    %589 = vmatpush1.msra.mxu0 %v489
    %590 = vmatprep.subr.mxu0 %v494
    %591 = vmatpush1.msra.mxu0 %v493
    %592 = vmatprep.subr.mxu0 0.0
    %593 = vmatpush1.msra.mxu0 0.0
    %594 = vmatprep.subr.mxu0 0.0
    %595 = vmatpush1.msra.mxu0 0.0
    %596 = vmatprep.subr.mxu0 0.0
    %597 = vmatpush1.msra.mxu0 0.0
    %598 = vmatprep.subr.mxu0 0.0
    %599 = vmatpush1.msra.mxu0 0.0
    %600 = vmatprep.subr.mxu0 0.0
    %601 = vmatpush1.msra.mxu0 0.0
    %602 = vmatprep.subr.mxu0 0.0
    %603 = vmatpush1.msra.mxu0 0.0
    %604 = vmatprep.subr.mxu0 0.0
    %605 = vmatpush1.msra.mxu0 0.0
    %606 = vmatprep.subr.mxu0 0.0
    %607 = vmatpush1.msra.mxu0 0.0
    %608 = vmatprep.subr.mxu0 0.0
    %609 = vmatpush1.msra.mxu0 0.0
    %610 = vmatprep.subr.mxu0 0.0
    %611 = vmatpush1.msra.mxu0 0.0
    %612 = vmatprep.subr.mxu0 0.0
    %613 = vmatpush1.msra.mxu0 0.0
    %614 = vmatprep.subr.mxu0 0.0
    %615 = vmatpush1.msra.mxu0 0.0
    %616 = vmatprep.subr.mxu0 0.0
    %617 = vmatpush1.msra.mxu0 0.0
    %618 = vmatprep.subr.mxu0 0.0
    %619 = vmatpush1.msra.mxu0 0.0
    %620 = vmatprep.subr.mxu0 0.0
    %621 = vmatpush1.msra.mxu0 0.0
    %622 = vmatprep.subr.mxu0 0.0
    %623 = vmatpush1.msra.mxu0 0.0
    %624 = vmatprep.subr.mxu0 0.0
    %625 = vmatpush1.msra.mxu0 0.0
    %626 = vmatprep.subr.mxu0 0.0
    %627 = vmatpush1.msra.mxu0 0.0
    %628 = vmatprep.subr.mxu0 0.0
    %629 = vmatpush1.msra.mxu0 0.0
    %630 = vmatprep.subr.mxu0 0.0
    %631 = vmatpush1.msra.mxu0 0.0
    %632 = vmatprep.subr.mxu0 0.0
    %633 = vmatpush1.msra.mxu0 0.0
    %634 = vmatprep.mubr.f32.mxu0 0.0
    %635 = vmatmul.mubr.f32.gmra.mrb[0].mxu0 %v497
    %v636 = vpop.f32.mrb[0].mxu0
    %v637 = vadd.f32 0.0, %v636
    %v638 = vpop.f32.mrb[0].mxu0
    %v639 = vadd.f32 0.0, %v638
    %640 = vdwg.mxu0
    %641 = vst [vmem:[#allocation10] sm:$0xff] %v566
    %642 = vst [vmem:[#allocation10 + $0x8] sm:$0xff] %v568
    %643 = vst [vmem:[#allocation10 + $0x10] sm:$0xff] %v637
    %644 = vst [vmem:[#allocation10 + $0x18] sm:$0xff] %v639
    %v645 = vmul.f32 %v566, %v566
    %v646 = vmul.f32 %v568, %v568
    %v647 = vmul.f32 %v637, %v637
    %v648 = vmul.f32 %v639, %v639
    %v649 = vrot.slane %v645, 4
    %v650 = vadd.f32 %v645, %v649
    %v651 = vrot.slane %v650, 2
    %v652 = vadd.f32 %v650, %v651
    %v653 = vrot.slane %v652, 1
    %v654 = vadd.f32 %v652, %v653
    %v655 = vrot.slane %v646, 4
    %v656 = vadd.f32 %v646, %v655
    %v657 = vrot.slane %v656, 2
    %v658 = vadd.f32 %v656, %v657
    %v659 = vrot.slane %v658, 1
    %v660 = vadd.f32 %v658, %v659
    %v661 = vrot.slane %v647, 4
    %v662 = vadd.f32 %v647, %v661
    %v663 = vrot.slane %v662, 2
    %v664 = vadd.f32 %v662, %v663
    %v665 = vrot.slane %v664, 1
    %v666 = vadd.f32 %v664, %v665
    %v667 = vrot.slane %v648, 4
    %v668 = vadd.f32 %v648, %v667
    %v669 = vrot.slane %v668, 2
    %v670 = vadd.f32 %v668, %v669
    %v671 = vrot.slane %v670, 1
    %v672 = vadd.f32 %v670, %v671
    %v677 = vcombine.low %v654, %v660
    %v678 = vcombine.low %v666, %v672
    %v680 = vunpack.c.l.s4 1966171168
    %v681 = vunpack.c.0.s8 %v680
    %v682 = vlaneseq
    %v683 = vshrl.u32 %v682, 7
    %v684 = vsub.s32 %v681, %v683
    %v685 = vrot.slane %v677, %v684
    %v687 = vunpack.c.l.s4 1966171168
    %v688 = vunpack.c.0.s8 %v687
    %v689 = vlaneseq
    %v690 = vshrl.u32 %v689, 7
    %v691 = vsub.s32 %v688, %v690
    %v692 = vrot.slane %v678, %v691
    %v693 = vcombine.low %v685, %v692
    %v695 = vunpack.c.l.s4 1966171168
    %v696 = vunpack.c.0.s8 %v695
    %v697 = vlaneseq
    %v698 = vshrl.u32 %v697, 7
    %v699 = vsub.s32 %v696, %v698
    %v700 = vrot.slane %v693, %v699
    %v702 = vlaneseq
    %vm703 = vcmp.ge.s32.totalorder %v702, 0
    %vm704 = vcmp.lt.s32.totalorder %v702, 512
    %vm705 = vmand %vm703, %vm704
    %706 = vst.msk [vmem:[#allocation11] sm:$0xf] %vm705, %v700
    // Predicated region
    $region30: #{tpu_custom_call.1} parent=1 // pred_check
      _
    $region31: #{tpu_custom_call.1} parent=1 // pred_check_branch
      %708 = sbr.rel (0) target = $region33
    $region32: #{tpu_custom_call.1} parent=1 // pred_region
      %s710 = ssub.s32 512, 512
      %711 = vsyncadd [#allocation6], %s710
      %s713 = sshll.u32 [#allocation10], 4
      %s714 = int_to_ptr.vmem [resolvable:$true] %s713
      %716 = dma.vmem_to_hbm [thread:$0]  %s714, 512, %s4, [#allocation6]
    $region33: #{tpu_custom_call.1} parent=1 // pred_fallthru
      _
    // Predicated region
    $region34: #{tpu_custom_call.1} parent=1 // pred_check
      _
    $region35: #{tpu_custom_call.1} parent=1 // pred_check_branch
      %718 = sbr.rel (0) target = $region37
    $region36: #{tpu_custom_call.1} parent=1 // pred_region
      %s720 = ssub.s32 64, 64
      %721 = vsyncadd [#allocation12], %s720
      %s723 = sshll.u32 [#allocation11], 4
      %s724 = int_to_ptr.vmem [resolvable:$true] %s723
      %726 = dma.vmem_to_hbm [thread:$0]  %s724, 64, %s5, [#allocation12]
    $region37: #{tpu_custom_call.1} parent=1 // pred_fallthru
      _
    // Predicated region
    $region38: #{tpu_custom_call.1} parent=1 // pred_check
      _
    $region39: #{tpu_custom_call.1} parent=1 // pred_check_branch
      %728 = sbr.rel (0) target = $region41
    $region40: #{tpu_custom_call.1} parent=1 // pred_region
      %729 = dma.done [#allocation6], 512
    $region41: #{tpu_custom_call.1} parent=1 // pred_fallthru
      _
    // Predicated region
    $region42: #{tpu_custom_call.1} parent=1 // pred_check
      _
    $region43: #{tpu_custom_call.1} parent=1 // pred_check_branch
      %731 = sbr.rel (0) target = $region45
    $region44: #{tpu_custom_call.1} parent=1 // pred_region
      %732 = dma.done [#allocation12], 64
    $region45: #{tpu_custom_call.1} parent=1 // pred_fallthru
      _
    %733 = vsyncpa [#allocation5], 1
    %734 = vsyncpa [#allocation8], 1
    %735 = vsyncpa [#allocation6], 1
    %736 = vsyncpa [#allocation12], 1

</llo_original>
